<compile_context>
chip_gen: v7x
topology: tpu7x:2x2x1
jax: 0.10.0
libtpu: 0.0.40
codegen_flags: <defaults>
</compile_context>

<pallas_src>
import functools

import jax
import jax.numpy as jnp
from jax.experimental import pallas as pl
from jax.experimental.pallas import tpu as pltpu

# Tunables (byte-based so bf16 predictions automatically get 2x the elements).
FUSED_BUDGET_BYTES = 4 * 1024 * 1024   # single-block fused path budget (padded f32)
TILE_BYTES = 4 * 1024 * 1024           # streaming-path block size (native dtype)
MAX_TILE_ELEMS = 2 * 1024 * 1024       # cap so f32 upcast temporaries stay bounded
VMEM_LIMIT_BYTES = 32 * 1024 * 1024    # scoped-VMEM limit (safe on v5e/v6e/v7x)


def _round_up(x, m):
    return -(-x // m) * m


def _elem_loss(p, y, use_lsgan, one_log):
    """Per-element GAN loss in f32 (p: f32 array, y: traced f32 scalar label)."""
    if use_lsgan:
        d = p - y
        return d * d
    if one_log:
        # Only valid when every configured label is exactly 0.0 or 1.0:
        # one EUP log per element instead of two.
        q = jnp.where(y > 0.5, p, 1.0 - p)
        return -jnp.maximum(jnp.log(q), jnp.float32(-100.0))
    # General BCE (e.g. label smoothing); logs clamped at -100 like torch.nn.BCELoss.
    log_p = jnp.maximum(jnp.log(p), jnp.float32(-100.0))
    log_1mp = jnp.maximum(jnp.log(1.0 - p), jnp.float32(-100.0))
    return -(y * log_p + (1.0 - y) * log_1mp)


# ---------------------------------------------------------------------------
# Fused single-block kernel: all (small) scales in one pallas_call, grid=(1,).
# ---------------------------------------------------------------------------
def _fused_kernel(label_ref, *refs, inv_ns, use_lsgan, one_log):
    pred_refs = refs[:-1]
    out_ref = refs[-1]
    y = label_ref[0]
    total = jnp.float32(0.0)
    for pred_ref, inv_n in zip(pred_refs, inv_ns):
        p = pred_ref[...].astype(jnp.float32)      # native-dtype DMA, in-reg upcast
        total = total + jnp.sum(_elem_loss(p, y, use_lsgan, one_log)) * jnp.float32(inv_n)
    out_ref[0, 0] = total


@functools.lru_cache(maxsize=None)
def _build_fused_call(views, inv_ns, use_lsgan, one_log):
    kernel = functools.partial(_fused_kernel, inv_ns=inv_ns,
                               use_lsgan=use_lsgan, one_log=one_log)
    in_specs = [pl.BlockSpec(memory_space=pltpu.SMEM)]          # label (1,)
    in_specs += [pl.BlockSpec(v, lambda i: (0, 0)) for v in views]
    call = pl.pallas_call(
        kernel,
        out_shape=jax.ShapeDtypeStruct((1, 1), jnp.float32),
        grid_spec=pltpu.PrefetchScalarGridSpec(
            num_scalar_prefetch=0,
            grid=(1,),
            in_specs=in_specs,
            out_specs=pl.BlockSpec((1, 1), lambda i: (0, 0),
                                   memory_space=pltpu.SMEM),
        ),
        compiler_params=pltpu.CompilerParams(
            dimension_semantics=("arbitrary",),
            vmem_limit_bytes=VMEM_LIMIT_BYTES),
    )

    def _run(label, *preds):
        preds2d = [jnp.reshape(p, v) for p, v in zip(preds, views)]
        return call(label, *preds2d)[0, 0]

    return jax.jit(_run)


# ---------------------------------------------------------------------------
# Streaming kernels for large predictions (rare for GAN discriminator heads).
# ---------------------------------------------------------------------------
def _tiled_lane_kernel(label_ref, pred_ref, out_ref, acc_ref, *,
                       rem_groups, inv_n, use_lsgan, one_log):
    """Lane-dense (groups, 8, 128) streaming sum with an (8, 128) accumulator."""
    i = pl.program_id(0)
    last = pl.num_programs(0) - 1

    @pl.when(i == 0)
    def _init():
        acc_ref[...] = jnp.zeros_like(acc_ref)

    p = pred_ref[...].astype(jnp.float32)                 # (g_tile, 8, 128)
    contrib = _elem_loss(p, label_ref[0], use_lsgan, one_log)

    if rem_groups == 0:
        # Every block is fully valid: pure vector adds into the (8,128) acc.
        acc_ref[...] += jnp.sum(contrib, axis=0)
    else:
        @pl.when(i != last)
        def _full():
            acc_ref[...] += jnp.sum(contrib, axis=0)

        @pl.when(i == last)
        def _partial():
            # Static prefix slice -> garbage in the partial edge block is
            # never read (no iota mask, no NaN propagation).
            acc_ref[...] += jnp.sum(contrib[:rem_groups], axis=0)

    @pl.when(i == last)
    def _finalize():
        out_ref[0, 0] = jnp.sum(acc_ref[...]) * jnp.float32(inv_n)


def _tiled_generic_kernel(label_ref, pred_ref, out_ref, acc_ref, *,
                          rem_rows, inv_n, use_lsgan, one_log):
    """(M, K) streaming sum; per-step sublane reduce amortised over a ~4 MiB tile."""
    i = pl.program_id(0)
    last = pl.num_programs(0) - 1

    @pl.when(i == 0)
    def _init():
        acc_ref[...] = jnp.zeros_like(acc_ref)

    p = pred_ref[...].astype(jnp.float32)                 # (tile_m, K)
    contrib = _elem_loss(p, label_ref[0], use_lsgan, one_log)

    if rem_rows == 0:
        acc_ref[...] += jnp.sum(contrib, axis=0, keepdims=True)
    else:
        @pl.when(i != last)
        def _full():
            acc_ref[...] += jnp.sum(contrib, axis=0, keepdims=True)

        @pl.when(i == last)
        def _partial():
            acc_ref[...] += jnp.sum(contrib[:rem_rows], axis=0, keepdims=True)

    @pl.when(i == last)
    def _finalize():
        out_ref[0, 0] = jnp.sum(acc_ref[...]) * jnp.float32(inv_n)


@functools.lru_cache(maxsize=None)
def _build_tiled_lane_call(n_groups, g_tile, inv_n, use_lsgan, one_log):
    grid_len = -(-n_groups // g_tile)
    rem = n_groups % g_tile
    view = (n_groups, 8, 128)
    kernel = functools.partial(_tiled_lane_kernel, rem_groups=rem, inv_n=inv_n,
                               use_lsgan=use_lsgan, one_log=one_log)
    call = pl.pallas_call(
        kernel,
        out_shape=jax.ShapeDtypeStruct((1, 1), jnp.float32),
        grid_spec=pltpu.PrefetchScalarGridSpec(
            num_scalar_prefetch=0,
            grid=(grid_len,),
            in_specs=[
                pl.BlockSpec(memory_space=pltpu.SMEM),             # label (1,)
                pl.BlockSpec((g_tile, 8, 128), lambda i: (i, 0, 0)),
            ],
            out_specs=pl.BlockSpec((1, 1), lambda i: (0, 0),
                                   memory_space=pltpu.SMEM),
            scratch_shapes=[pltpu.VMEM((8, 128), jnp.float32)],
        ),
        compiler_params=pltpu.CompilerParams(
            dimension_semantics=("arbitrary",),
            vmem_limit_bytes=VMEM_LIMIT_BYTES),
    )

    def _run(label, x):
        return call(label, jnp.reshape(x, view))[0, 0]

    return jax.jit(_run)


@functools.lru_cache(maxsize=None)
def _build_tiled_generic_call(m, k, tile_m, inv_n, use_lsgan, one_log):
    grid_len = -(-m // tile_m)
    rem = m % tile_m
    view = (m, k)
    kernel = functools.partial(_tiled_generic_kernel, rem_rows=rem, inv_n=inv_n,
                               use_lsgan=use_lsgan, one_log=one_log)
    call = pl.pallas_call(
        kernel,
        out_shape=jax.ShapeDtypeStruct((1, 1), jnp.float32),
        grid_spec=pltpu.PrefetchScalarGridSpec(
            num_scalar_prefetch=0,
            grid=(grid_len,),
            in_specs=[
                pl.BlockSpec(memory_space=pltpu.SMEM),             # label (1,)
                pl.BlockSpec((tile_m, k), lambda i: (i, 0)),
            ],
            out_specs=pl.BlockSpec((1, 1), lambda i: (0, 0),
                                   memory_space=pltpu.SMEM),
            scratch_shapes=[pltpu.VMEM((1, k), jnp.float32)],
        ),
        compiler_params=pltpu.CompilerParams(
            dimension_semantics=("arbitrary",),
            vmem_limit_bytes=VMEM_LIMIT_BYTES),
    )

    def _run(label, x):
        return call(label, jnp.reshape(x, view))[0, 0]

    return jax.jit(_run)


# ---------------------------------------------------------------------------
# Wrapper-side dispatch (no pads, no concatenates, only free bitcast reshapes).
# ---------------------------------------------------------------------------
def _fused_view(pred):
    """Order-preserving 2-D view used by the single-block fused path."""
    n = int(pred.size)
    if n % 128 == 0:
        return (n // 128, 128)                 # perfectly lane-dense
    if n % 8 == 0:
        return (8, n // 8)                     # sublane-dense, tiny lane padding
    if pred.ndim >= 2:
        return (n // int(pred.shape[-1]), int(pred.shape[-1]))
    return (1, n)


def _padded_f32_bytes(view):
    r, c = view
    return _round_up(max(r, 1), 8) * _round_up(max(c, 1), 128) * 4


def _tiled_loss(pred, label_arr, use_lsgan, one_log):
    """Streaming reduction for predictions too large for the single-block path."""
    n = int(pred.size)
    itemsize = jnp.dtype(pred.dtype).itemsize
    inv_n = 1.0 / n
    if n % (8 * 128) == 0:
        # Lane-dense (groups, 8, 128) view; ~4 MiB blocks (8 MiB for bf16 elems).
        n_groups = n // (8 * 128)
        g_tile = TILE_BYTES // (8 * 128 * itemsize)
        g_tile = max(1, min(g_tile, MAX_TILE_ELEMS // (8 * 128), n_groups))
        fn = _build_tiled_lane_call(n_groups, g_tile, inv_n, use_lsgan, one_log)
    else:
        # Ragged total size: tile the leading axis of a free 2-D view and keep
        # the full last dim per block (always a legal BlockSpec, never padded).
        if n % 128 == 0:
            k = 128
        elif pred.ndim >= 2:
            k = int(pred.shape[-1])
        else:
            k = 1   # TODO(synk): pathological huge 1-D ragged input (never a D output)
        m = n // k
        padded_k = _round_up(k, 128)
        tile_m = (TILE_BYTES // (padded_k * itemsize)) // 8 * 8
        tile_m = min(tile_m, max(8, (MAX_TILE_ELEMS // padded_k) // 8 * 8))
        tile_m = max(8, tile_m)
        tile_m = min(tile_m, _round_up(m, 8))
        fn = _build_tiled_generic_call(m, k, tile_m, inv_n, use_lsgan, one_log)
    return fn(label_arr, pred)


def _gan_loss(preds, label_arr, use_lsgan, one_log):
    pieces = []
    fused_items = []
    for pred in preds:
        n = int(pred.size)
        if n == 0:
            continue
        view = _fused_view(pred)
        fbytes = _padded_f32_bytes(view)
        if fbytes <= FUSED_BUDGET_BYTES:
            fused_items.append((view, 1.0 / n, pred, fbytes))
        else:
            pieces.append(_tiled_loss(pred, label_arr, use_lsgan, one_log))

    # Pack the small predictions into as few fused calls as possible
    # (typically exactly one, even for a multiscale discriminator).
    chunks, cur, cur_bytes = [], [], 0
    for item in fused_items:
        if cur and cur_bytes + item[3] > FUSED_BUDGET_BYTES:
            chunks.append(cur)
            cur, cur_bytes = [], 0
        cur.append(item)
        cur_bytes += item[3]
    if cur:
        chunks.append(cur)

    for chunk in chunks:
        views = tuple(it[0] for it in chunk)
        inv_ns = tuple(it[1] for it in chunk)
        arrays = [it[2] for it in chunk]
        fn = _build_fused_call(views, inv_ns, use_lsgan, one_log)
        pieces.append(fn(label_arr, *arrays))

    if not pieces:
        return jnp.float32(0.0)
    total = pieces[0]
    for p in pieces[1:]:
        total = total + p
    return total


class GANLoss:
    """JAX/Pallas port of the PyTorch GANLoss module (forward only)."""

    def __init__(self, use_lsgan=True, target_real_label=1.0,
                 target_gene_label=0.0):
        self.use_lsgan = bool(use_lsgan)
        self.real_label = float(target_real_label)
        self.gene_label = float(target_gene_label)
        # One-log BCE is only equivalent when every possible target is exactly
        # 0 or 1; label-smoothing configs fall back to the two-log kernel.
        self.one_log = (not self.use_lsgan) and all(
            lbl in (0.0, 1.0) for lbl in (self.real_label, self.gene_label))

    def __call__(self, x, target_is_real):
        label = self.real_label if target_is_real else self.gene_label
        label_arr = jnp.asarray([label], dtype=jnp.float32)
        if isinstance(x[0], (list, tuple)):
            preds = [scale[-1] for scale in x]       # multiscale: last of each
        else:
            preds = [x[-1]]                          # single scale: last element
        return _gan_loss(preds, label_arr, self.use_lsgan, self.one_log)


def _ref_loss(pred, label, use_lsgan):
    p = pred.astype(jnp.float32)
    if use_lsgan:
        return jnp.mean((p - label) ** 2)
    return jnp.mean(-(label * jnp.log(p) + (1.0 - label) * jnp.log(1.0 - p)))


if __name__ == "__main__":
    key = jax.random.PRNGKey(0)
    k1, k2, k3, k4, k5 = jax.random.split(key, 5)

    # Simulated NLayer discriminator outputs (NCHW); predictions in (0, 1)
    # so they are also valid for the BCE branch.
    feat = jax.random.normal(k1, (2, 4, 16, 16), dtype=jnp.float32)
    pred_a = jax.nn.sigmoid(jax.random.normal(k2, (2, 1, 16, 16), dtype=jnp.float32))
    pred_b = jax.nn.sigmoid(jax.random.normal(k3, (2, 1, 8, 8), dtype=jnp.float32))
    pred_c = jax.nn.sigmoid(jax.random.normal(k4, (1, 1, 30, 30), dtype=jnp.float32))

    gan_ls = GANLoss(use_lsgan=True)

    # ---- single-scale: x is a list, pred = x[-1] ----
    loss_real = gan_ls([feat, pred_a], target_is_real=True)
    loss_fake = gan_ls([feat, pred_a], target_is_real=False)
    jax.block_until_ready((loss_real, loss_fake))
    assert jnp.allclose(loss_real, _ref_loss(pred_a, 1.0, True), atol=1e-5)
    assert jnp.allclose(loss_fake, _ref_loss(pred_a, 0.0, True), atol=1e-5)

    # ---- multiscale: both scales fused into ONE pallas_call ----
    loss_multi = gan_ls([[feat, pred_a], [feat, pred_b]], target_is_real=True)
    jax.block_until_ready(loss_multi)
    ref_multi = _ref_loss(pred_a, 1.0, True) + _ref_loss(pred_b, 1.0, True)
    assert jnp.allclose(loss_multi, ref_multi, atol=1e-5)

    # ---- size not a multiple of 128: odd full-array block, no pad pass ----
    loss_odd = gan_ls([feat, pred_c], target_is_real=True)
    jax.block_until_ready(loss_odd)
    assert jnp.allclose(loss_odd, _ref_loss(pred_c, 1.0, True), atol=1e-5)

    # ---- bf16 prediction (native-dtype DMA, in-kernel upcast) ----
    pred_bf16 = pred_a.astype(jnp.bfloat16)
    loss_bf16 = gan_ls([feat, pred_bf16], target_is_real=True)
    jax.block_until_ready(loss_bf16)
    assert jnp.allclose(loss_bf16, _ref_loss(pred_bf16, 1.0, True), atol=1e-4)

    # ---- BCE branch with labels in {0,1}: one-log kernel ----
    gan_bce = GANLoss(use_lsgan=False)
    loss_bce_r = gan_bce([feat, pred_a], target_is_real=True)
    loss_bce_f = gan_bce([feat, pred_a], target_is_real=False)
    jax.block_until_ready((loss_bce_r, loss_bce_f))
    assert jnp.allclose(loss_bce_r, _ref_loss(pred_a, 1.0, False), atol=1e-4)
    assert jnp.allclose(loss_bce_f, _ref_loss(pred_a, 0.0, False), atol=1e-4)

    # ---- BCE with label smoothing: two-log fallback ----
    gan_bce_s = GANLoss(use_lsgan=False, target_real_label=0.9)
    loss_bce_s = gan_bce_s([feat, pred_a], target_is_real=True)
    jax.block_until_ready(loss_bce_s)
    assert jnp.allclose(loss_bce_s, _ref_loss(pred_a, 0.9, False), atol=1e-4)

    # ---- large prediction -> streaming lane-dense kernel ((8,128) acc, masked tail) ----
    big_a = jax.random.normal(k5, (1, 1, 1032, 1024), dtype=jnp.float32)
    loss_big_a = gan_ls([feat, big_a], target_is_real=True)
    jax.block_until_ready(loss_big_a)
    assert jnp.allclose(loss_big_a, _ref_loss(big_a, 1.0, True), rtol=1e-4, atol=1e-4)

    # ---- large ragged prediction -> generic streaming kernel ----
    big_b = jax.random.normal(k5, (1, 1, 1030, 1030), dtype=jnp.float32)
    loss_big_b = gan_ls([feat, big_b], target_is_real=False)
    jax.block_until_ready(loss_big_b)
    assert jnp.allclose(loss_big_b, _ref_loss(big_b, 0.0, True), rtol=1e-4, atol=1e-4)

    print("KERNEL_OK")
</pallas_src>

<mosaic_0001>
module attributes {stable_mosaic.version = 11 : i64} {
  func.func @_fused_kernel(%arg0: i32, %arg1: memref<1xf32, #tpu.memory_space<smem>>, %arg2: memref<4x128xf32, #tpu.memory_space<vmem>>, %arg3: memref<1x1xf32, #tpu.memory_space<smem>>) attributes {dimension_semantics = [#tpu.dimension_semantics<arbitrary>], iteration_bounds = array<i64: 1>, scalar_prefetch = 0 : i64, scratch_operands = 0 : i64, tpu.core_type = #tpu.core_type<tc>, window_params = [{transform_indices = @transform_0, window_bounds = array<i64: 1>}, {pipeline_mode = #tpu.pipeline_mode<synchronous>, transform_indices = @transform_1, window_bounds = array<i64: 4, 128>}, {transform_indices = @transform_2, window_bounds = array<i64: 1, 1>}]} {
    %c0 = arith.constant 0 : index
    %0 = memref.load %arg1[%c0] : memref<1xf32, #tpu.memory_space<smem>>
    %c0_0 = arith.constant 0 : index
    %c0_1 = arith.constant 0 : index
    %1 = vector.load %arg2[%c0_0, %c0_1] : memref<4x128xf32, #tpu.memory_space<vmem>>, vector<4x128xf32>
    %2 = vector.broadcast %0 : f32 to vector<4x128xf32>
    %3 = arith.subf %1, %2 : vector<4x128xf32>
    %4 = arith.mulf %3, %3 : vector<4x128xf32>
    %5 = vector.shape_cast %4 : vector<4x128xf32> to vector<1x4x128xf32>
    %cst = arith.constant dense<0.000000e+00> : vector<1xf32>
    %6 = vector.multi_reduction <add>, %5, %cst [1, 2] : vector<1x4x128xf32> to vector<1xf32>
    %7 = vector.shape_cast %6 : vector<1xf32> to vector<1x1x1xf32>
    %8 = vector.extract %7[0, 0, 0] : f32 from vector<1x1x1xf32>
    %cst_2 = arith.constant 0.001953125 : f32
    %9 = arith.mulf %8, %cst_2 : f32
    %cst_3 = arith.constant 0.000000e+00 : f32
    %10 = arith.addf %cst_3, %9 : f32
    %c0_4 = arith.constant 0 : index
    %c0_5 = arith.constant 0 : index
    %11 = memref.load %arg3[%c0_4, %c0_5] : memref<1x1xf32, #tpu.memory_space<smem>>
    memref.store %10, %arg3[%c0_4, %c0_5] : memref<1x1xf32, #tpu.memory_space<smem>>
    return
  }
  func.func @transform_0(%arg0: i32) -> i32 {
    %c0_i32 = arith.constant 0 : i32
    %c0_i32_0 = arith.constant 0 : i32
    return %c0_i32 : i32
  }
  func.func @transform_1(%arg0: i32) -> (i32, i32) {
    %c0_i32 = arith.constant 0 : i32
    %c0_i32_0 = arith.constant 0 : i32
    %c0_i32_1 = arith.constant 0 : i32
    return %c0_i32, %c0_i32_0 : i32, i32
  }
  func.func @transform_2(%arg0: i32) -> (i32, i32) {
    %c0_i32 = arith.constant 0 : i32
    %c0_i32_0 = arith.constant 0 : i32
    %c0_i32_1 = arith.constant 0 : i32
    return %c0_i32, %c0_i32_0 : i32, i32
  }
}

</mosaic_0001>

<llo_original>
// kernel: _run.1
$region0: #{_run.1}
  #allocation0 [shape = 'u32[]', space=smem, size = 0x4, offset = 0x4, fixed_abs, tag = 'smem constant byte address 0x4 - core index']
  #allocation1 [shape = 'u32[144,128]{1,0:T(1,128)}', space=vmem, size = 0x12000, scoped, tag = 'internal scratch']
  #allocation2 [shape = 'f32[1]{0:T(128)S(6)}', space=smem, size = 0x200, scoped, tag = 'scoped memory for _run.1']
  %s0 = inlined_call_operand.<no memory space> [shape: f32[1], index: 0, kind: input, shape index: {}]
  %s1 = inlined_call_operand.vmem [shape: f32[4,128], index: 1, kind: input, shape index: {}]
  %s2 = inlined_call_operand.hbm [shape: f32[1,1], index: 2, kind: output, shape index: {}]
  %s3 = sld [smem:[#allocation0]]
  $region18: #{_run.1} parent=0
    _
  %s5 = ssub.s32 1, %s3
  %s6 = scalar_select 0, %s5, %s3
  %7 = sst [smem:[#allocation2]] %s0
  $region1: #{_run.1} parent=0
    #allocation3 [shape = 'u8[512]{0}', space=smem, size = 0x200, scoped, tag = 'output window, operand 0, single buffered']
    #allocation4 [shape = 's32[1]{0}', space=sflag, size = 0x4, scoped, tag = 'scoped memory for _run.1']
    %8 = vsyncpa [#allocation4], 0
    // Predicated region
    $region2: #{_run.1} parent=1 // pred_check
      _
    $region3: #{_run.1} parent=1 // pred_check_branch
      %10 = sbr.rel (0) target = $region5
    $region4: #{_run.1} parent=1 // pred_region
      _
    $region5: #{_run.1} parent=1 // pred_fallthru
      _
    // Predicated region
    $region6: #{_run.1} parent=1 // pred_check
      _
    $region7: #{_run.1} parent=1 // pred_check_branch
      %12 = sbr.rel (0) target = $region9
    $region8: #{_run.1} parent=1 // pred_region
      _
    $region9: #{_run.1} parent=1 // pred_fallthru
      _
    %s13 = sld [smem:[#allocation2]]
    %v14 = vld [vmem:[%s1] sm:$0xf]
    %v15 = vstv %s13
    %v16 = vsub.f32 %v14, %v15
    %v17 = vmul.f32 %v16, %v16
    %vm18 = vcmask 1043456
    %v19 = vsel %vm18, %v17, 0.0
    %20 = vadd.xlane.f32.xlu0 %v19
    %v21 = vpop.xlane.xlu0 %20
    %v22 = vrot.slane %v21, 4
    %v23 = vadd.f32 %v21, %v22
    %v24 = vrot.slane %v23, 2
    %v25 = vadd.f32 %v23, %v24
    %v26 = vrot.slane %v25, 1
    %v27 = vadd.f32 %v25, %v26
    %s28 = vtos %v27
    %s29 = smul.f32 %s28, 0.001953125
    %s30 = sadd.f32 %s29, 0.0
    %s31 = scalar_lea.smem [#allocation3], 0
    %32 = sst [smem:[%s31]] %s30
    // Predicated region
    $region10: #{_run.1} parent=1 // pred_check
      _
    $region11: #{_run.1} parent=1 // pred_check_branch
      %34 = sbr.rel (0) target = $region13
    $region12: #{_run.1} parent=1 // pred_region
      %s36 = ssub.s32 16, 16
      %37 = vsyncadd [#allocation4], %s36
      %40 = dma.smem_to_hbm [#allocation3], 16, %s2, [#allocation4]
    $region13: #{_run.1} parent=1 // pred_fallthru
      _
    // Predicated region
    $region14: #{_run.1} parent=1 // pred_check
      _
    $region15: #{_run.1} parent=1 // pred_check_branch
      %42 = sbr.rel (0) target = $region17
    $region16: #{_run.1} parent=1 // pred_region
      %43 = dma.done [#allocation4], 16
    $region17: #{_run.1} parent=1 // pred_fallthru
      _
    %44 = sfence
    %45 = vsyncpa [#allocation4], 1

</llo_original>
